<compile_context>
chip_gen: v7x
topology: tpu7x:2x2x1
jax: 0.10.0
libtpu: 0.0.40
codegen_flags: <defaults>
</compile_context>

<pallas_src>
import functools

import jax
import jax.numpy as jnp
from jax.experimental import pallas as pl
from jax.experimental.pallas import tpu as pltpu

EPS = 1e-6


# ------------------------------ tiling helper --------------------------------
def _tile_rows(R, F, itemsize, target_bytes=1 << 20):
    """Row-tile size: multiple of the sublane packing, ~<=1 MiB per block."""
    row_mult = max(8, 32 // int(itemsize))          # 8 (f32), 16 (bf16), 32 (i8)
    if R <= row_mult:
        return R                                     # full-dim block is exempt
    tr = max(row_mult, min(R, target_bytes // max(1, F * int(itemsize))))
    tr = (tr // row_mult) * row_mult
    return max(row_mult, tr)


def _dropout_threshold(p):
    """uint32 threshold t such that P(bits >= t) == 1 - p for uniform bits."""
    return int(min((1 << 32) - 1, round(float(p) * (1 << 32))))


# ----------------------------- LayerNorm kernel -----------------------------
def _ln_kernel(x_ref, alpha_ref, bias_ref, o_ref):
    x = x_ref[...].astype(jnp.float32)
    alpha = alpha_ref[...].astype(jnp.float32)       # (1, F), hoisted once
    bias = bias_ref[...].astype(jnp.float32)
    n = x.shape[-1]
    mean = jnp.mean(x, axis=-1, keepdims=True)
    d = x - mean
    # torch .std() default: unbiased (ddof=1); eps added to std, not variance.
    var = jnp.sum(d * d, axis=-1, keepdims=True) * (1.0 / max(n - 1, 1))
    inv = 1.0 / (jnp.sqrt(var) + EPS)                # one divide per row [TR,1]
    o_ref[...] = (alpha * (d * inv) + bias).astype(o_ref.dtype)


def layer_norm_pallas(x2d, alpha, bias):
    R, F = x2d.shape
    TR = _tile_rows(R, F, jnp.dtype(x2d.dtype).itemsize)
    return pl.pallas_call(
        _ln_kernel,
        out_shape=jax.ShapeDtypeStruct((R, F), x2d.dtype),
        grid=(pl.cdiv(R, TR),),
        in_specs=[
            pl.BlockSpec((TR, F), lambda i: (i, 0)),
            pl.BlockSpec((1, F), lambda i: (0, 0)),   # resident across grid
            pl.BlockSpec((1, F), lambda i: (0, 0)),
        ],
        out_specs=pl.BlockSpec((TR, F), lambda i: (i, 0)),
        compiler_params=pltpu.CompilerParams(
            dimension_semantics=("parallel",)),
    )(x2d, alpha.reshape(1, F), bias.reshape(1, F))


# ----------------------- residual add (+ dropout) kernels --------------------
def _res_add_kernel(x_ref, y_ref, o_ref):
    x = x_ref[...].astype(jnp.float32)
    y = y_ref[...].astype(jnp.float32)
    o_ref[...] = (x + y).astype(o_ref.dtype)


def _res_dropout_kernel(x_ref, y_ref, bits_ref, o_ref, *, threshold, scale):
    x = x_ref[...].astype(jnp.float32)
    y = y_ref[...].astype(jnp.float32)
    keep = bits_ref[...] >= jnp.uint32(threshold)     # integer-threshold mask
    o_ref[...] = (x + jnp.where(keep, y * scale, 0.0)).astype(o_ref.dtype)


def residual_add_pallas(x2d, y2d):
    """Eval mode (dropout == identity): out = x + y."""
    R, F = x2d.shape
    TR = _tile_rows(R, F, jnp.dtype(x2d.dtype).itemsize)
    spec = pl.BlockSpec((TR, F), lambda i: (i, 0))
    # TODO(synk): under jit, pass input_output_aliases={1: 0} to reuse y's
    # buffer for the output (avoided here to keep eager execution warning-free)
    return pl.pallas_call(
        _res_add_kernel,
        out_shape=jax.ShapeDtypeStruct((R, F), x2d.dtype),
        grid=(pl.cdiv(R, TR),),
        in_specs=[spec, spec],
        out_specs=spec,
        compiler_params=pltpu.CompilerParams(
            dimension_semantics=("parallel",)),
    )(x2d, y2d)


def residual_dropout_add_pallas(x2d, y2d, bits2d, *, p):
    """Train mode: out = x + dropout_p(y), inverted-dropout scaling."""
    R, F = x2d.shape
    TR = _tile_rows(R, F, jnp.dtype(x2d.dtype).itemsize)
    spec = pl.BlockSpec((TR, F), lambda i: (i, 0))
    kern = functools.partial(
        _res_dropout_kernel,
        threshold=_dropout_threshold(p),
        scale=float(1.0 / (1.0 - p)),
    )
    return pl.pallas_call(
        kern,
        out_shape=jax.ShapeDtypeStruct((R, F), x2d.dtype),
        grid=(pl.cdiv(R, TR),),
        in_specs=[spec, spec, spec],
        out_specs=spec,
        compiler_params=pltpu.CompilerParams(
            dimension_semantics=("parallel",)),
    )(x2d, y2d, bits2d)


# ------------------------------ module wrapper -------------------------------
def residual_connection(x, sublayer, alpha, bias, *, dropout_p=0.1,
                        train=False, rng_key=None):
    """out = x + dropout(sublayer(layer_norm(x)))  (forward of the nn.Module)."""
    B, S, F = x.shape
    x2 = x.reshape(B * S, F)
    ln = layer_norm_pallas(x2, alpha, bias).reshape(B, S, F)
    y2 = sublayer(ln).reshape(B * S, F)    # arbitrary user sublayer (plain JAX)
    if train and dropout_p > 0.0:
        if rng_key is None:
            rng_key = jax.random.PRNGKey(0)
        # TODO(synk): on a pure-TPU deployment the bits could be drawn
        # in-kernel with pltpu.prng_random_bits to save one HBM read stream;
        # that primitive has no CPU/interpret lowering, so bits are streamed in.
        bits = jax.random.bits(rng_key, (B * S, F), dtype=jnp.uint32)
        out = residual_dropout_add_pallas(x2, y2, bits, p=float(dropout_p))
    else:
        out = residual_add_pallas(x2, y2)
    return out.reshape(B, S, F)


# ------------------------------ pure-JAX reference ---------------------------
def _ref_layer_norm(x, alpha, bias):
    mean = jnp.mean(x, axis=-1, keepdims=True)
    std = jnp.sqrt(jnp.var(x, axis=-1, keepdims=True, ddof=1))
    return alpha * (x - mean) / (std + EPS) + bias


def _ref_residual_eval(x, sublayer, alpha, bias):
    return x + sublayer(_ref_layer_norm(x, alpha, bias))


if __name__ == "__main__":
    key = jax.random.PRNGKey(0)
    B, S, F = 2, 8, 128            # F multiple of 128 -> lane-dense stores
    dropout_p = 0.1

    k_x, k_w, k_b = jax.random.split(key, 3)
    x = jax.random.normal(k_x, (B, S, F), dtype=jnp.float32)

    # LayerNormalization parameters (init: alpha=ones, bias=zeros)
    alpha = jnp.ones((F,), dtype=jnp.float32)
    bias = jnp.zeros((F,), dtype=jnp.float32)

    # Deterministic example sublayer: a simple Linear(F, F) in plain JAX.
    W = jax.random.normal(k_w, (F, F), dtype=jnp.float32) * 0.1
    b = jax.random.normal(k_b, (F,), dtype=jnp.float32) * 0.1
    sublayer = lambda h: h @ W + b

    # ---- Eval mode (dropout identity): exact check vs pure-JAX reference ----
    out_eval = residual_connection(
        x, sublayer, alpha, bias, dropout_p=dropout_p, train=False
    )
    jax.block_until_ready(out_eval)
    ref_eval = _ref_residual_eval(x, sublayer, alpha, bias)
    assert out_eval.shape == (B, S, F)
    assert jnp.allclose(out_eval, ref_eval, atol=1e-4, rtol=1e-4), (
        float(jnp.max(jnp.abs(out_eval - ref_eval)))
    )

    # ---- Train mode: bits are generated host-side, so the dropout path can
    # be checked exactly against a JAX reference using the same bits. --------
    drop_key = jax.random.PRNGKey(1234)
    out_train = residual_connection(
        x, sublayer, alpha, bias, dropout_p=dropout_p, train=True,
        rng_key=drop_key,
    )
    jax.block_until_ready(out_train)
    bits_ref = jax.random.bits(drop_key, (B * S, F),
                               dtype=jnp.uint32).reshape(B, S, F)
    keep_ref = bits_ref >= jnp.uint32(_dropout_threshold(dropout_p))
    y_ref = sublayer(_ref_layer_norm(x, alpha, bias))
    ref_train = x + jnp.where(keep_ref, y_ref * (1.0 / (1.0 - dropout_p)), 0.0)
    assert out_train.shape == (B, S, F)
    assert bool(jnp.all(jnp.isfinite(out_train)))
    assert jnp.allclose(out_train, ref_train, atol=1e-4, rtol=1e-4), (
        float(jnp.max(jnp.abs(out_train - ref_train)))
    )

    print("KERNEL_OK")
</pallas_src>

<mosaic_0001>
module attributes {stable_mosaic.version = 11 : i64} {
  func.func @_ln_kernel(%arg0: i32, %arg1: memref<16x128xf32, #tpu.memory_space<vmem>>, %arg2: memref<1x128xf32, #tpu.memory_space<vmem>>, %arg3: memref<1x128xf32, #tpu.memory_space<vmem>>, %arg4: memref<16x128xf32, #tpu.memory_space<vmem>>) attributes {dimension_semantics = [#tpu.dimension_semantics<parallel>], iteration_bounds = array<i64: 1>, scalar_prefetch = 0 : i64, scratch_operands = 0 : i64, tpu.core_type = #tpu.core_type<tc>, window_params = [{transform_indices = @transform_0, window_bounds = array<i64: 16, 128>}, {pipeline_mode = #tpu.pipeline_mode<synchronous>, transform_indices = @transform_1, window_bounds = array<i64: 1, 128>}, {pipeline_mode = #tpu.pipeline_mode<synchronous>, transform_indices = @transform_2, window_bounds = array<i64: 1, 128>}, {transform_indices = @transform_3, window_bounds = array<i64: 16, 128>}]} {
    %c0 = arith.constant 0 : index
    %c0_0 = arith.constant 0 : index
    %0 = vector.load %arg1[%c0, %c0_0] : memref<16x128xf32, #tpu.memory_space<vmem>>, vector<16x128xf32>
    %c0_1 = arith.constant 0 : index
    %c0_2 = arith.constant 0 : index
    %1 = vector.load %arg2[%c0_1, %c0_2] : memref<1x128xf32, #tpu.memory_space<vmem>>, vector<1x128xf32>
    %c0_3 = arith.constant 0 : index
    %c0_4 = arith.constant 0 : index
    %2 = vector.load %arg3[%c0_3, %c0_4] : memref<1x128xf32, #tpu.memory_space<vmem>>, vector<1x128xf32>
    %cst = arith.constant dense<0.000000e+00> : vector<16xf32>
    %3 = vector.multi_reduction <add>, %0, %cst [1] : vector<16x128xf32> to vector<16xf32>
    %4 = vector.shape_cast %3 : vector<16xf32> to vector<16x1xf32>
    %cst_5 = arith.constant 1.280000e+02 : f32
    %5 = vector.broadcast %cst_5 : f32 to vector<16x1xf32>
    %6 = arith.divf %4, %5 : vector<16x1xf32>
    %7 = vector.broadcast %6 : vector<16x1xf32> to vector<16x128xf32>
    %8 = arith.subf %0, %7 : vector<16x128xf32>
    %9 = arith.mulf %8, %8 : vector<16x128xf32>
    %cst_6 = arith.constant dense<0.000000e+00> : vector<16xf32>
    %10 = vector.multi_reduction <add>, %9, %cst_6 [1] : vector<16x128xf32> to vector<16xf32>
    %11 = vector.shape_cast %10 : vector<16xf32> to vector<16x1xf32>
    %cst_7 = arith.constant 0.00787401571 : f32
    %12 = vector.broadcast %cst_7 : f32 to vector<16x1xf32>
    %13 = arith.mulf %11, %12 : vector<16x1xf32>
    %14 = math.sqrt %13 : vector<16x1xf32>
    %cst_8 = arith.constant 9.99999997E-7 : f32
    %15 = vector.broadcast %cst_8 : f32 to vector<16x1xf32>
    %16 = arith.addf %14, %15 : vector<16x1xf32>
    %cst_9 = arith.constant 1.000000e+00 : f32
    %17 = vector.broadcast %cst_9 : f32 to vector<16x1xf32>
    %18 = arith.divf %17, %16 : vector<16x1xf32>
    %19 = vector.broadcast %18 : vector<16x1xf32> to vector<16x128xf32>
    %20 = arith.mulf %8, %19 : vector<16x128xf32>
    %21 = vector.broadcast %1 : vector<1x128xf32> to vector<16x128xf32>
    %22 = arith.mulf %21, %20 : vector<16x128xf32>
    %23 = vector.broadcast %2 : vector<1x128xf32> to vector<16x128xf32>
    %24 = arith.addf %22, %23 : vector<16x128xf32>
    %c0_10 = arith.constant 0 : index
    %c0_11 = arith.constant 0 : index
    %25 = vector.load %arg4[%c0_10, %c0_11] : memref<16x128xf32, #tpu.memory_space<vmem>>, vector<16x128xf32>
    tpu.vector_store %arg4[%c0_10, %c0_11], %24 {strides = array<i32>} : memref<16x128xf32, #tpu.memory_space<vmem>>, vector<16x128xf32>,
    return
  }
  func.func @transform_0(%arg0: i32) -> (i32, i32) {
    %c0_i32 = arith.constant 0 : i32
    %c0_i32_0 = arith.constant 0 : i32
    return %arg0, %c0_i32 : i32, i32
  }
  func.func @transform_1(%arg0: i32) -> (i32, i32) {
    %c0_i32 = arith.constant 0 : i32
    %c0_i32_0 = arith.constant 0 : i32
    %c0_i32_1 = arith.constant 0 : i32
    return %c0_i32, %c0_i32_0 : i32, i32
  }
  func.func @transform_2(%arg0: i32) -> (i32, i32) {
    %c0_i32 = arith.constant 0 : i32
    %c0_i32_0 = arith.constant 0 : i32
    %c0_i32_1 = arith.constant 0 : i32
    return %c0_i32, %c0_i32_0 : i32, i32
  }
  func.func @transform_3(%arg0: i32) -> (i32, i32) {
    %c0_i32 = arith.constant 0 : i32
    %c0_i32_0 = arith.constant 0 : i32
    return %arg0, %c0_i32 : i32, i32
  }
}

</mosaic_0001>

<llo_original>
// kernel: tpu_custom_call.1
$region0: #{tpu_custom_call.1}
  #allocation0 [shape = 'u32[]', space=smem, size = 0x4, offset = 0x4, fixed_abs, tag = 'smem constant byte address 0x4 - core index']
  #allocation1 [shape = 'u32[144,128]{1,0:T(1,128)}', space=vmem, size = 0x12000, scoped, tag = 'internal scratch']
  %s0 = inlined_call_operand.hbm [shape: f32[16,128], index: 0, kind: input, shape index: {}]
  %s1 = inlined_call_operand.vmem [shape: f32[1,128], index: 1, kind: input, shape index: {}]
  %s2 = inlined_call_operand.vmem [shape: f32[1,128], index: 2, kind: input, shape index: {}]
  %s3 = inlined_call_operand.hbm [shape: f32[16,128], index: 3, kind: output, shape index: {}]
  %s4 = sld [smem:[#allocation0]]
  $region26: #{tpu_custom_call.1} parent=0
    _
  %s6 = ssub.s32 1, %s4
  %s7 = scalar_select 0, %s6, %s4
  $region1: #{tpu_custom_call.1} parent=0
    #allocation2 [shape = 'u8[8192]{0}', space=vmem, size = 0x2000, scoped, tag = 'input window, operand 0, single buffered']
    #allocation3 [shape = 's32[1]{0}', space=sflag, size = 0x4, scoped, tag = 'scoped memory for tpu_custom_call.1']
    #allocation4 [shape = 's32[1]{0}', space=sflag, size = 0x4, scoped, tag = 'scoped memory for tpu_custom_call.1']
    #allocation5 [shape = 'u8[8192]{0}', space=vmem, size = 0x2000, scoped, tag = 'output window, operand 0, single buffered']
    %8 = vsyncpa [#allocation3], 0
    %9 = vsyncpa [#allocation4], 0
    // Predicated region
    $region2: #{tpu_custom_call.1} parent=1 // pred_check
      _
    $region3: #{tpu_custom_call.1} parent=1 // pred_check_branch
      %11 = sbr.rel (0) target = $region5
    $region4: #{tpu_custom_call.1} parent=1 // pred_region
      %s13 = ssub.s32 256, 256
      %14 = vsyncadd [#allocation3], %s13
      %s15 = sshll.u32 [#allocation2], 4
      %s16 = int_to_ptr.vmem [resolvable:$true] %s15
      %21 = dma.hbm_to_vmem [thread:$0]  %s0, 256, %s16, [#allocation3], 128, 128, 8
    $region5: #{tpu_custom_call.1} parent=1 // pred_fallthru
      _
    // Predicated region
    $region6: #{tpu_custom_call.1} parent=1 // pred_check
      _
    $region7: #{tpu_custom_call.1} parent=1 // pred_check_branch
      %23 = sbr.rel (0) target = $region9
    $region8: #{tpu_custom_call.1} parent=1 // pred_region
      _
    $region9: #{tpu_custom_call.1} parent=1 // pred_fallthru
      _
    // Predicated region
    $region10: #{tpu_custom_call.1} parent=1 // pred_check
      _
    $region11: #{tpu_custom_call.1} parent=1 // pred_check_branch
      %25 = sbr.rel (0) target = $region13
    $region12: #{tpu_custom_call.1} parent=1 // pred_region
      _
    $region13: #{tpu_custom_call.1} parent=1 // pred_fallthru
      _
    // Predicated region
    $region14: #{tpu_custom_call.1} parent=1 // pred_check
      _
    $region15: #{tpu_custom_call.1} parent=1 // pred_check_branch
      %27 = sbr.rel (0) target = $region17
    $region16: #{tpu_custom_call.1} parent=1 // pred_region
      %28 = dma.done [#allocation3], 256
    $region17: #{tpu_custom_call.1} parent=1 // pred_fallthru
      _
    %v29 = vld [vmem:[#allocation2] sm:$0xff]
    %v30 = vld [vmem:[#allocation2 + $0x8] sm:$0xff]
    %v31 = vld [vmem:[%s1] sm:$0x1]
    %v32 = vld [vmem:[%s2] sm:$0x1]
    %33 = vadd.xlane.f32.xlu0 %v29
    %v34 = vpop.xlane.xlu0 %33
    %35 = vadd.xlane.f32.xlu0 %v30
    %v36 = vpop.xlane.xlu0 %35
    %v37 = vrcp.pop 128.0
    %v38 = vmul.f32 %v34, %v37
    %v39 = vmul.f32 %v36, %v37
    %v40 = vsub.f32 %v29, %v38
    %v41 = vsub.f32 %v30, %v39
    %v42 = vmul.f32 %v40, %v40
    %v43 = vmul.f32 %v41, %v41
    %44 = vadd.xlane.f32.xlu0 %v42
    %v45 = vpop.xlane.xlu0 %44
    %46 = vadd.xlane.f32.xlu0 %v43
    %v47 = vpop.xlane.xlu0 %46
    %v48 = vmul.f32 %v45, 0.007874016
    %v49 = vmul.f32 %v47, 0.007874016
    %v50 = vrsqrt.pop %v48
    %v51 = vmul.f32 %v48, %v50
    %vm52 = vcmp.eq.f32.partialorder %v48, inf
    %v53 = vsel %vm52, %v48, %v51
    %vm54 = vcmp.eq.f32.partialorder %v48, 0.0
    %v55 = vand.u32 %v48, 2147483648
    %v56 = vsel %vm54, %v55, %v53
    %v57 = vrsqrt.pop %v49
    %v58 = vmul.f32 %v49, %v57
    %vm59 = vcmp.eq.f32.partialorder %v49, inf
    %v60 = vsel %vm59, %v49, %v58
    %vm61 = vcmp.eq.f32.partialorder %v49, 0.0
    %v62 = vand.u32 %v49, 2147483648
    %v63 = vsel %vm61, %v62, %v60
    %v64 = vadd.f32 %v56, 1e-06
    %v65 = vadd.f32 %v63, 1e-06
    %v66 = vrcp.pop %v64
    %v67 = vmul.f32 1.0, %v66
    %v68 = vrcp.pop %v65
    %v69 = vmul.f32 1.0, %v68
    %v70 = vmul.f32 %v40, %v67
    %v71 = vmul.f32 %v41, %v69
    %v73 = vlaneseq
    %v74 = vshrl.u32 %v73, 7
    %v75 = vsub.s32 0, %v74
    %v76 = vrot.slane %v31, %v75
    %v78 = vmul.f32 %v76, %v70
    %v79 = vmul.f32 %v76, %v71
    %v81 = vlaneseq
    %v82 = vshrl.u32 %v81, 7
    %v83 = vsub.s32 0, %v82
    %v84 = vrot.slane %v32, %v83
    %v86 = vadd.f32 %v78, %v84
    %v87 = vadd.f32 %v79, %v84
    %88 = vst [vmem:[#allocation5] sm:$0xff] %v86
    %89 = vst [vmem:[#allocation5 + $0x8] sm:$0xff] %v87
    // Predicated region
    $region18: #{tpu_custom_call.1} parent=1 // pred_check
      _
    $region19: #{tpu_custom_call.1} parent=1 // pred_check_branch
      %91 = sbr.rel (0) target = $region21
    $region20: #{tpu_custom_call.1} parent=1 // pred_region
      %s93 = ssub.s32 256, 256
      %94 = vsyncadd [#allocation4], %s93
      %s95 = sshll.u32 [#allocation5], 4
      %s96 = int_to_ptr.vmem [resolvable:$true] %s95
      %101 = dma.vmem_to_hbm [thread:$0]  %s96, 256, %s3, [#allocation4], 128, 128, 8
    $region21: #{tpu_custom_call.1} parent=1 // pred_fallthru
      _
    // Predicated region
    $region22: #{tpu_custom_call.1} parent=1 // pred_check
      _
    $region23: #{tpu_custom_call.1} parent=1 // pred_check_branch
      %103 = sbr.rel (0) target = $region25
    $region24: #{tpu_custom_call.1} parent=1 // pred_region
      %104 = dma.done [#allocation4], 256
    $region25: #{tpu_custom_call.1} parent=1 // pred_fallthru
      _
    %105 = vsyncpa [#allocation3], 1
    %106 = vsyncpa [#allocation4], 1

</llo_original>
